<compile_context>
chip_gen: v7x
topology: tpu7x:2x2x1
jax: 0.10.0
libtpu: 0.0.40
codegen_flags: <defaults>
</compile_context>

<pallas_src>
import functools

import jax
import jax.numpy as jnp
from jax.experimental import pallas as pl
from jax.experimental.pallas import tpu as pltpu

# Module hyper-parameters (EnsembleLoss defaults).
ALPHA = 0.5
GAMMA = 2.0
REG_WEIGHT = 0.001

_VMEM_LIMIT_BYTES = 48 * 1024 * 1024   # <= 64 MiB/TC (v7x), << 128 MiB (v5e/v6e)


def _ensemble_loss_kernel(logits_ref, targets_ref, out_ref, focal_acc, sq_acc,
                          *, gamma, n_total, blocks_per_split, n_blocks):
    s = pl.program_id(0)          # split index ("parallel"; one per TC on v7x)
    i = pl.program_id(1)          # row-block index within the split ("arbitrary")
    tm, c = logits_ref.shape
    block_idx = s * blocks_per_split + i

    @pl.when(i == 0)
    def _init():
        focal_acc[...] = jnp.zeros_like(focal_acc)
        sq_acc[...] = jnp.zeros_like(sq_acc)

    # Fully-clamped duplicate blocks (only possible when num_splits does not
    # divide the block count) skip all exp/reduce work and accumulate nothing.
    @pl.when(block_idx < n_blocks)
    def _accumulate():
        logits = logits_ref[...].astype(jnp.float32)          # (TM, C)
        # Lane-dense (1, TM) targets row -> (TM, 1) column (one layout move).
        targets = targets_ref[0, :][:, None]                   # (TM, 1) int32

        # Logical global row of each row in this block; ragged-tail rows of the
        # last block are masked out below (their HBM contents are undefined).
        row = jax.lax.broadcasted_iota(jnp.int32, (tm, 1), 0) + block_idx * tm
        valid = row < n_total                                  # (TM, 1) bool

        # --- per-sample cross entropy via stable log-softmax --------------
        # No full-tile masking of logits: every accumulated quantity below is
        # gated by a where-*select* on `valid`, so NaN/Inf in invalid rows
        # cannot propagate (reductions here are strictly per-row).
        m = jnp.max(logits, axis=-1, keepdims=True)                          # (TM,1)
        shifted = logits - m
        lse = m + jnp.log(jnp.sum(jnp.exp(shifted), axis=-1, keepdims=True)) # (TM,1)

        lane = jax.lax.broadcasted_iota(jnp.int32, (tm, c), 1)               # (TM,C)
        tgt_logit = jnp.sum(jnp.where(lane == targets, logits, 0.0),
                            axis=-1, keepdims=True)                          # (TM,1)

        ce = lse - tgt_logit                                                 # (TM,1)
        pt = jnp.exp(-ce)
        one_minus_pt = 1.0 - pt
        if float(gamma).is_integer() and int(gamma) >= 1:
            mod = one_minus_pt ** int(gamma)          # integer_pow: pure VALU
        else:
            # clamp: ce can be numerically slightly negative -> pt > 1.
            mod = jnp.maximum(one_minus_pt, 0.0) ** jnp.float32(gamma)
        focal_term = jnp.where(valid, mod * ce, 0.0)                         # (TM,1)

        # Row-wise sum of squares (for the Frobenius regularizer), row-masked.
        rowsq = jnp.sum(logits * logits, axis=-1, keepdims=True)             # (TM,1)
        rowsq = jnp.where(valid, rowsq, 0.0)

        focal_acc[...] += jnp.sum(focal_term, keepdims=True)                 # (1,1)
        sq_acc[...] += jnp.sum(rowsq, keepdims=True)                         # (1,1)

    @pl.when(i == pl.num_programs(1) - 1)
    def _finalize():
        # Emit this split's partial sums into a lane-aligned (1,8,128) block:
        #   [0,0,0] = sum(focal_term), [0,0,1] = sum(logits^2), rest = 0.
        shape = out_ref.shape
        sub = jax.lax.broadcasted_iota(jnp.int32, shape, 1)
        lane_o = jax.lax.broadcasted_iota(jnp.int32, shape, 2)
        fb = jnp.broadcast_to(focal_acc[...], shape)
        qb = jnp.broadcast_to(sq_acc[...], shape)
        first = sub == 0
        out_ref[...] = jnp.where(first & (lane_o == 0), fb,
                                 jnp.where(first & (lane_o == 1), qb, 0.0))


def _pick_block_rows(n_classes, itemsize):
    # (a) move ~2 MiB of logits per grid step (per-step overhead ~0.35 us), and
    # (b) keep the in-kernel f32 temporaries -- several (TM,C)-wide values plus
    #     lane-padded (TM,1) row quantities -- well under the 48 MiB VMEM limit.
    per_buffer = 2 * 1024 * 1024
    tm_dma = per_buffer // max(1, n_classes * itemsize)
    temp_budget = 24 * 1024 * 1024
    tm_vmem = temp_budget // (8 * max(n_classes, 128) * 4)
    align = 8 if itemsize >= 4 else 16
    tm = max(align, min(tm_dma, tm_vmem, 8192))
    return (tm // align) * align


def _default_num_splits():
    # The outer "parallel" axis only buys anything on chips with >1 TensorCore
    # (v7x). On single-TC v5e/v6e it is just a serial loop, so default to 1.
    try:
        info = pltpu.get_tpu_info()
        for attr in ("num_cores", "num_tensorcores", "tensorcore_count",
                     "core_count", "num_cores_per_chip"):
            v = getattr(info, attr, None)
            if v is not None:
                return 2 if int(v) > 1 else 1
    except Exception:
        pass
    return 1


def ensemble_loss(logits, targets, *, alpha=ALPHA, gamma=GAMMA, reg_w=REG_WEIGHT,
                  block_rows=None, num_splits=None, logits_buffer_count=None):
    """logits: (N, C) float32/bfloat16; targets: (N,) int. Returns scalar f32 loss."""
    n, c = logits.shape
    itemsize = jnp.dtype(logits.dtype).itemsize
    align = 8 if itemsize >= 4 else 16

    if block_rows is None:
        block_rows = _pick_block_rows(c, itemsize)
    if n <= block_rows:
        tm = n                                     # single full-extent block
    else:
        tm = max(align, (min(block_rows, n) // align) * align)

    nb = pl.cdiv(n, tm)                            # total row blocks
    if num_splits is None:
        num_splits = _default_num_splits()
    num_splits = max(1, min(num_splits, nb))
    bps = pl.cdiv(nb, num_splits)                  # row blocks per split

    # Lane-dense targets: pad to nb*tm rows and reshape to (nb, tm) so each
    # block is one dense tm*4-byte DMA row instead of a strided (tm,1) copy.
    targets_i32 = targets.astype(jnp.int32)
    pad = nb * tm - n
    if pad:
        targets_i32 = jnp.pad(targets_i32, (0, pad))
    targets_rows = targets_i32.reshape(nb, tm)

    def row_block_map(s, i):
        # Clamp trailing logical blocks into range; kernel skips their compute.
        return (jnp.minimum(s * bps + i, nb - 1), 0)

    if logits_buffer_count is None:
        logits_spec = pl.BlockSpec((tm, c), row_block_map)
    else:
        # v7x knob: deeper pipelining if DMA latency is exposed at 3.2 TB/s.
        logits_spec = pl.BlockSpec((tm, c), row_block_map,
                                   pipeline_mode=pl.Buffered(logits_buffer_count))

    kernel = functools.partial(
        _ensemble_loss_kernel, gamma=gamma, n_total=n,
        blocks_per_split=bps, n_blocks=nb)

    cost = pl.CostEstimate(
        flops=10 * n * c,
        transcendentals=n * c + 3 * n,
        bytes_accessed=n * c * itemsize + n * 4 + num_splits * 8 * 128 * 4,
    )

    partials = pl.pallas_call(
        kernel,
        out_shape=jax.ShapeDtypeStruct((num_splits, 8, 128), jnp.float32),
        grid_spec=pltpu.PrefetchScalarGridSpec(
            num_scalar_prefetch=0,
            grid=(num_splits, bps),
            in_specs=[
                logits_spec,
                pl.BlockSpec((1, tm), row_block_map),
            ],
            out_specs=pl.BlockSpec((1, 8, 128), lambda s, i: (s, 0, 0)),
            scratch_shapes=[
                pltpu.VMEM((1, 1), jnp.float32),   # sum of focal_term
                pltpu.VMEM((1, 1), jnp.float32),   # sum of logits^2
            ],
        ),
        compiler_params=pltpu.CompilerParams(
            dimension_semantics=("parallel", "arbitrary"),
            vmem_limit_bytes=_VMEM_LIMIT_BYTES,
        ),
        cost_estimate=cost,
    )(logits, targets_rows)

    focal_sum = jnp.sum(partials[:, 0, 0])
    sq_sum = jnp.sum(partials[:, 0, 1])
    # loss = focal.mean() + alpha*focal.mean() + reg_w*||logits||_F
    return (1.0 + alpha) * (focal_sum / n) + reg_w * jnp.sqrt(sq_sum)


def _reference(logits, targets, alpha=ALPHA, gamma=GAMMA, reg_w=REG_WEIGHT):
    """Pure-JAX reference mirroring the PyTorch module (weights=False path)."""
    logits = logits.astype(jnp.float32)
    logp = jax.nn.log_softmax(logits, axis=-1)
    ce = -jnp.take_along_axis(logp, targets[:, None], axis=-1)[:, 0]
    pt = jnp.exp(-ce)
    focal = jnp.mean((1.0 - pt) ** gamma * ce)
    eq = jnp.mean(alpha * (1.0 - pt) ** gamma * ce) + reg_w * jnp.sqrt(
        jnp.sum(logits * logits))
    return focal + eq


if __name__ == "__main__":
    key = jax.random.PRNGKey(0)
    k1, k2 = jax.random.split(key)

    N, C = 100, 128  # batch, num_classes (lane-dense classification logits)
    logits = jax.random.normal(k1, (N, C), dtype=jnp.float32)
    targets = jax.random.randint(k2, (N,), 0, C, dtype=jnp.int32)

    ref = _reference(logits, targets)

    # 1) Auto-tiled path (single full-extent block at this small N).
    loss_auto = jax.block_until_ready(ensemble_loss(logits, targets))
    # 2) Forced multi-block path with a ragged last block (100 = 3*32 + 4).
    loss_tiled = jax.block_until_ready(
        ensemble_loss(logits, targets, block_rows=32))
    # 3) Two splits with a clamped (skipped) duplicate block: nb=3, bps=2.
    loss_split = jax.block_until_ready(
        ensemble_loss(logits, targets, block_rows=48, num_splits=2))

    for got in (loss_auto, loss_tiled, loss_split):
        assert jnp.allclose(got, ref, rtol=1e-5, atol=1e-5), (got, ref)

    print("KERNEL_OK")
</pallas_src>

<mosaic_0001>
module attributes {stable_mosaic.version = 11 : i64} {
  func.func @_ensemble_loss_kernel(%arg0: i32, %arg1: i32, %arg2: memref<100x128xf32, #tpu.memory_space<vmem>>, %arg3: memref<1x100xi32, #tpu.memory_space<vmem>>, %arg4: memref<1x8x128xf32, #tpu.memory_space<vmem>>, %arg5: memref<1x1xf32, #tpu.memory_space<vmem>>, %arg6: memref<1x1xf32, #tpu.memory_space<vmem>>) attributes {dimension_semantics = [#tpu.dimension_semantics<parallel>, #tpu.dimension_semantics<arbitrary>], iteration_bounds = array<i64: 1, 1>, scalar_prefetch = 0 : i64, scratch_operands = 2 : i64, tpu.core_type = #tpu.core_type<tc>, window_params = [{transform_indices = @transform_0, window_bounds = array<i64: 100, 128>}, {transform_indices = @transform_1, window_bounds = array<i64: 1, 100>}, {transform_indices = @transform_2, window_bounds = array<i64: 1, 8, 128>}]} {
    %c1_i32 = arith.constant 1 : i32
    %0 = arith.muli %arg0, %c1_i32 : i32
    %1 = arith.addi %0, %arg1 : i32
    %c0_i32 = arith.constant 0 : i32
    %2 = arith.cmpi eq, %arg1, %c0_i32 : i32
    %3 = arith.extui %2 : i1 to i32
    %c0_i32_0 = arith.constant 0 : i32
    %4 = arith.cmpi ne, %3, %c0_i32_0 : i32
    scf.if %4 {
      %cst = arith.constant 0.000000e+00 : f32
      %11 = vector.broadcast %cst : f32 to vector<1x1xf32>
      %c0 = arith.constant 0 : index
      %c0_5 = arith.constant 0 : index
      %12 = vector.load %arg5[%c0, %c0_5] : memref<1x1xf32, #tpu.memory_space<vmem>>, vector<1x1xf32>
      tpu.vector_store %arg5[%c0, %c0_5], %11 {strides = array<i32>} : memref<1x1xf32, #tpu.memory_space<vmem>>, vector<1x1xf32>,
      %cst_6 = arith.constant 0.000000e+00 : f32
      %13 = vector.broadcast %cst_6 : f32 to vector<1x1xf32>
      %c0_7 = arith.constant 0 : index
      %c0_8 = arith.constant 0 : index
      %14 = vector.load %arg6[%c0_7, %c0_8] : memref<1x1xf32, #tpu.memory_space<vmem>>, vector<1x1xf32>
      tpu.vector_store %arg6[%c0_7, %c0_8], %13 {strides = array<i32>} : memref<1x1xf32, #tpu.memory_space<vmem>>, vector<1x1xf32>,
    } else {
    }
    %c1_i32_1 = arith.constant 1 : i32
    %5 = arith.cmpi slt, %1, %c1_i32_1 : i32
    %6 = arith.extui %5 : i1 to i32
    %c0_i32_2 = arith.constant 0 : i32
    %7 = arith.cmpi ne, %6, %c0_i32_2 : i32
    scf.if %7 {
      %c0 = arith.constant 0 : index
      %c0_5 = arith.constant 0 : index
      %11 = vector.load %arg2[%c0, %c0_5] : memref<100x128xf32, #tpu.memory_space<vmem>>, vector<100x128xf32>
      %c0_6 = arith.constant 0 : index
      %c0_7 = arith.constant 0 : index
      %12 = vector.load %arg3[%c0_6, %c0_7] : memref<1x100xi32, #tpu.memory_space<vmem>>, vector<1x100xi32>
      %13 = vector.shape_cast %12 : vector<1x100xi32> to vector<100xi32>
      %14 = vector.shape_cast %13 : vector<100xi32> to vector<100x1xi32>
      %15 = tpu.iota {dimensions = array<i32: 0>} : vector<100x1xi32>
      %c100_i32 = arith.constant 100 : i32
      %16 = arith.muli %1, %c100_i32 : i32
      %17 = vector.broadcast %16 : i32 to vector<100x1xi32>
      %18 = arith.addi %15, %17 : vector<100x1xi32>
      %c100_i32_8 = arith.constant 100 : i32
      %19 = vector.broadcast %c100_i32_8 : i32 to vector<100x1xi32>
      %20 = arith.cmpi slt, %18, %19 : vector<100x1xi32>
      %cst = arith.constant dense<0xFF800000> : vector<100xf32>
      %21 = vector.multi_reduction <maximumf>, %11, %cst [1] : vector<100x128xf32> to vector<100xf32>
      %22 = vector.shape_cast %21 : vector<100xf32> to vector<100x1xf32>
      %23 = vector.broadcast %22 : vector<100x1xf32> to vector<100x128xf32>
      %24 = arith.subf %11, %23 : vector<100x128xf32>
      %25 = math.exp %24 : vector<100x128xf32>
      %cst_9 = arith.constant dense<0.000000e+00> : vector<100xf32>
      %26 = vector.multi_reduction <add>, %25, %cst_9 [1] : vector<100x128xf32> to vector<100xf32>
      %27 = vector.shape_cast %26 : vector<100xf32> to vector<100x1xf32>
      %28 = math.log %27 : vector<100x1xf32>
      %29 = arith.addf %22, %28 : vector<100x1xf32>
      %30 = tpu.iota {dimensions = array<i32: 1>} : vector<100x128xi32>
      %31 = vector.broadcast %14 : vector<100x1xi32> to vector<100x128xi32>
      %32 = arith.cmpi eq, %30, %31 : vector<100x128xi32>
      %cst_10 = arith.constant 0.000000e+00 : f32
      %33 = vector.broadcast %cst_10 : f32 to vector<100x128xf32>
      %34 = arith.select %32, %11, %33 : vector<100x128xi1>, vector<100x128xf32>
      %cst_11 = arith.constant dense<0.000000e+00> : vector<100xf32>
      %35 = vector.multi_reduction <add>, %34, %cst_11 [1] : vector<100x128xf32> to vector<100xf32>
      %36 = vector.shape_cast %35 : vector<100xf32> to vector<100x1xf32>
      %37 = arith.subf %29, %36 : vector<100x1xf32>
      %cst_12 = arith.constant 0.000000e+00 : f32
      %38 = vector.broadcast %cst_12 : f32 to vector<100x1xf32>
      %39 = arith.subf %38, %37 : vector<100x1xf32>
      %40 = math.exp %39 : vector<100x1xf32>
      %cst_13 = arith.constant 1.000000e+00 : f32
      %41 = vector.broadcast %cst_13 : f32 to vector<100x1xf32>
      %42 = arith.subf %41, %40 : vector<100x1xf32>
      %43 = arith.mulf %42, %42 : vector<100x1xf32>
      %44 = arith.mulf %43, %37 : vector<100x1xf32>
      %cst_14 = arith.constant 0.000000e+00 : f32
      %45 = vector.broadcast %cst_14 : f32 to vector<100x1xf32>
      %46 = arith.select %20, %44, %45 : vector<100x1xi1>, vector<100x1xf32>
      %47 = arith.mulf %11, %11 : vector<100x128xf32>
      %cst_15 = arith.constant dense<0.000000e+00> : vector<100xf32>
      %48 = vector.multi_reduction <add>, %47, %cst_15 [1] : vector<100x128xf32> to vector<100xf32>
      %49 = vector.shape_cast %48 : vector<100xf32> to vector<100x1xf32>
      %cst_16 = arith.constant 0.000000e+00 : f32
      %50 = vector.broadcast %cst_16 : f32 to vector<100x1xf32>
      %51 = arith.select %20, %49, %50 : vector<100x1xi1>, vector<100x1xf32>
      %c0_17 = arith.constant 0 : index
      %c0_18 = arith.constant 0 : index
      %52 = vector.load %arg5[%c0_17, %c0_18] : memref<1x1xf32, #tpu.memory_space<vmem>>, vector<1x1xf32>
      %53 = vector.shape_cast %46 : vector<100x1xf32> to vector<1x100x1xf32>
      %cst_19 = arith.constant dense<0.000000e+00> : vector<1xf32>
      %54 = vector.multi_reduction <add>, %53, %cst_19 [1, 2] : vector<1x100x1xf32> to vector<1xf32>
      %55 = vector.shape_cast %54 : vector<1xf32> to vector<1x1x1xf32>
      %56 = vector.extract %55[0, 0, 0] : f32 from vector<1x1x1xf32>
      %57 = vector.broadcast %56 : f32 to vector<1x1xf32>
      %58 = arith.addf %52, %57 : vector<1x1xf32>
      %c0_20 = arith.constant 0 : index
      %c0_21 = arith.constant 0 : index
      %59 = vector.load %arg5[%c0_20, %c0_21] : memref<1x1xf32, #tpu.memory_space<vmem>>, vector<1x1xf32>
      tpu.vector_store %arg5[%c0_20, %c0_21], %58 {strides = array<i32>} : memref<1x1xf32, #tpu.memory_space<vmem>>, vector<1x1xf32>,
      %c0_22 = arith.constant 0 : index
      %c0_23 = arith.constant 0 : index
      %60 = vector.load %arg6[%c0_22, %c0_23] : memref<1x1xf32, #tpu.memory_space<vmem>>, vector<1x1xf32>
      %61 = vector.shape_cast %51 : vector<100x1xf32> to vector<1x100x1xf32>
      %cst_24 = arith.constant dense<0.000000e+00> : vector<1xf32>
      %62 = vector.multi_reduction <add>, %61, %cst_24 [1, 2] : vector<1x100x1xf32> to vector<1xf32>
      %63 = vector.shape_cast %62 : vector<1xf32> to vector<1x1x1xf32>
      %64 = vector.extract %63[0, 0, 0] : f32 from vector<1x1x1xf32>
      %65 = vector.broadcast %64 : f32 to vector<1x1xf32>
      %66 = arith.addf %60, %65 : vector<1x1xf32>
      %c0_25 = arith.constant 0 : index
      %c0_26 = arith.constant 0 : index
      %67 = vector.load %arg6[%c0_25, %c0_26] : memref<1x1xf32, #tpu.memory_space<vmem>>, vector<1x1xf32>
      tpu.vector_store %arg6[%c0_25, %c0_26], %66 {strides = array<i32>} : memref<1x1xf32, #tpu.memory_space<vmem>>, vector<1x1xf32>,
    } else {
    }
    %c0_i32_3 = arith.constant 0 : i32
    %8 = arith.cmpi eq, %arg1, %c0_i32_3 : i32
    %9 = arith.extui %8 : i1 to i32
    %c0_i32_4 = arith.constant 0 : i32
    %10 = arith.cmpi ne, %9, %c0_i32_4 : i32
    scf.if %10 {
      %11 = tpu.iota {dimensions = array<i32: 1>} : vector<1x8x128xi32>
      %12 = tpu.iota {dimensions = array<i32: 2>} : vector<1x8x128xi32>
      %c0 = arith.constant 0 : index
      %c0_5 = arith.constant 0 : index
      %13 = vector.load %arg5[%c0, %c0_5] : memref<1x1xf32, #tpu.memory_space<vmem>>, vector<1x1xf32>
      %14 = vector.shape_cast %13 : vector<1x1xf32> to vector<1x1x1xf32>
      %15 = vector.broadcast %14 : vector<1x1x1xf32> to vector<1x8x128xf32>
      %c0_6 = arith.constant 0 : index
      %c0_7 = arith.constant 0 : index
      %16 = vector.load %arg6[%c0_6, %c0_7] : memref<1x1xf32, #tpu.memory_space<vmem>>, vector<1x1xf32>
      %17 = vector.shape_cast %16 : vector<1x1xf32> to vector<1x1x1xf32>
      %18 = vector.broadcast %17 : vector<1x1x1xf32> to vector<1x8x128xf32>
      %c0_i32_8 = arith.constant 0 : i32
      %19 = vector.broadcast %c0_i32_8 : i32 to vector<1x8x128xi32>
      %20 = arith.cmpi eq, %11, %19 : vector<1x8x128xi32>
      %c0_i32_9 = arith.constant 0 : i32
      %21 = vector.broadcast %c0_i32_9 : i32 to vector<1x8x128xi32>
      %22 = arith.cmpi eq, %12, %21 : vector<1x8x128xi32>
      %23 = arith.andi %20, %22 : vector<1x8x128xi1>
      %c1_i32_10 = arith.constant 1 : i32
      %24 = vector.broadcast %c1_i32_10 : i32 to vector<1x8x128xi32>
      %25 = arith.cmpi eq, %12, %24 : vector<1x8x128xi32>
      %26 = arith.andi %20, %25 : vector<1x8x128xi1>
      %cst = arith.constant 0.000000e+00 : f32
      %27 = vector.broadcast %cst : f32 to vector<1x8x128xf32>
      %28 = arith.select %26, %18, %27 : vector<1x8x128xi1>, vector<1x8x128xf32>
      %29 = arith.select %23, %15, %28 : vector<1x8x128xi1>, vector<1x8x128xf32>
      %c0_11 = arith.constant 0 : index
      %c0_12 = arith.constant 0 : index
      %c0_13 = arith.constant 0 : index
      %30 = vector.load %arg4[%c0_11, %c0_12, %c0_13] : memref<1x8x128xf32, #tpu.memory_space<vmem>>, vector<1x8x128xf32>
      tpu.vector_store %arg4[%c0_11, %c0_12, %c0_13], %29 {strides = array<i32>} : memref<1x8x128xf32, #tpu.memory_space<vmem>>, vector<1x8x128xf32>,
    } else {
    }
    return
  }
  func.func @transform_0(%arg0: i32, %arg1: i32) -> (i32, i32) {
    %c1_i32 = arith.constant 1 : i32
    %0 = arith.muli %arg0, %c1_i32 : i32
    %1 = arith.addi %0, %arg1 : i32
    %c0_i32 = arith.constant 0 : i32
    %2 = arith.minsi %1, %c0_i32 : i32
    %c0_i32_0 = arith.constant 0 : i32
    %c0_i32_1 = arith.constant 0 : i32
    return %2, %c0_i32_0 : i32, i32
  }
  func.func @transform_1(%arg0: i32, %arg1: i32) -> (i32, i32) {
    %c1_i32 = arith.constant 1 : i32
    %0 = arith.muli %arg0, %c1_i32 : i32
    %1 = arith.addi %0, %arg1 : i32
    %c0_i32 = arith.constant 0 : i32
    %2 = arith.minsi %1, %c0_i32 : i32
    %c0_i32_0 = arith.constant 0 : i32
    %c0_i32_1 = arith.constant 0 : i32
    return %2, %c0_i32_0 : i32, i32
  }
  func.func @transform_2(%arg0: i32, %arg1: i32) -> (i32, i32, i32) {
    %c0_i32 = arith.constant 0 : i32
    %c0_i32_0 = arith.constant 0 : i32
    %c0_i32_1 = arith.constant 0 : i32
    return %arg0, %c0_i32, %c0_i32_0 : i32, i32, i32
  }
}

</mosaic_0001>

<llo_original>
// kernel: tpu_custom_call.1
$region0: #{tpu_custom_call.1}
  #allocation0 [shape = 'u32[]', space=smem, size = 0x4, offset = 0x4, fixed_abs, tag = 'smem constant byte address 0x4 - core index']
  #allocation1 [shape = 'u32[144,128]{1,0:T(1,128)}', space=vmem, size = 0x12000, scoped, tag = 'internal scratch']
  #allocation2 [shape = 'f32[1,1]{1,0:T(1,128)}', space=vmem, size = 0x200, scoped, tag = 'scratch operand']
  #allocation3 [shape = 'f32[1,1]{1,0:T(1,128)}', space=vmem, size = 0x200, scoped, tag = 'scratch operand']
  %s0 = inlined_call_operand.hbm [shape: f32[100,128], index: 0, kind: input, shape index: {}]
  %s1 = inlined_call_operand.vmem [shape: s32[1,100], index: 1, kind: input, shape index: {}]
  %s2 = inlined_call_operand.hbm [shape: f32[1,8,128], index: 2, kind: output, shape index: {}]
  %s3 = sld [smem:[#allocation0]]
  $region34: #{tpu_custom_call.1} parent=0
    _
  %s5 = ssub.s32 1, %s3
  %s6 = scalar_select 0, %s5, %s3
  $region1: #{tpu_custom_call.1} parent=0
    #allocation4 [shape = 'u8[53248]{0}', space=vmem, size = 0xd000, scoped, tag = 'input window, operand 0, single buffered']
    #allocation5 [shape = 's32[1]{0}', space=sflag, size = 0x4, scoped, tag = 'scoped memory for tpu_custom_call.1']
    #allocation6 [shape = 's32[1]{0}', space=sflag, size = 0x4, scoped, tag = 'scoped memory for tpu_custom_call.1']
    #allocation7 [shape = 'u8[4096]{0}', space=vmem, size = 0x1000, scoped, tag = 'output window, operand 0, single buffered']
    %7 = vsyncpa [#allocation5], 0
    %8 = vsyncpa [#allocation6], 0
    // Predicated region
    $region2: #{tpu_custom_call.1} parent=1 // pred_check
      _
    $region3: #{tpu_custom_call.1} parent=1 // pred_check_branch
      %10 = sbr.rel (0) target = $region5
    $region4: #{tpu_custom_call.1} parent=1 // pred_region
      %s11 = sadd.s32 0, 0
      %p12 = scmp.lt.s32.totalorder %s11, 0
      %s13 = scalar_select %p12, %s11, 0
      %s14 = smul.u32 13, %s13
      %s16 = ssub.s32 1664, 1664
      %17 = vsyncadd [#allocation5], %s16
      %s18 = smul.addr %s14, 128
      %s19 = scalar_lea.hbm %s0, %s18
      %s20 = sshll.u32 [#allocation4], 4
      %s21 = int_to_ptr.vmem [resolvable:$true] %s20
      %26 = dma.hbm_to_vmem [thread:$0]  %s19, 1664, %s21, [#allocation5], 128, 128, 8
    $region5: #{tpu_custom_call.1} parent=1 // pred_fallthru
      _
    // Predicated region
    $region6: #{tpu_custom_call.1} parent=1 // pred_check
      _
    $region7: #{tpu_custom_call.1} parent=1 // pred_check_branch
      %28 = sbr.rel (0) target = $region9
    $region8: #{tpu_custom_call.1} parent=1 // pred_region
      %s29 = sadd.s32 0, 0
      %p30 = scmp.lt.s32.totalorder %s29, 0
      %s31 = scalar_select %p30, %s29, 0
      %p32 = scmp.lt.s32.totalorder %s31, 0
      %s33 = scalar_select %p32, %s31, 0
      %s34 = scalar_lea.vmem %s1, %s33
      %s35 = sadd.s32 0, 0
      %p36 = scmp.lt.s32.totalorder %s35, 0
      %s37 = scalar_select %p36, %s35, 0
    $region9: #{tpu_custom_call.1} parent=1 // pred_fallthru
      _
    // Predicated region
    $region10: #{tpu_custom_call.1} parent=1 // pred_check
      _
    $region11: #{tpu_custom_call.1} parent=1 // pred_check_branch
      %39 = sbr.rel (0) target = $region13
    $region12: #{tpu_custom_call.1} parent=1 // pred_region
      %40 = dma.done [#allocation5], 1664
    $region13: #{tpu_custom_call.1} parent=1 // pred_fallthru
      _
    %s41 = sadd.s32 0, 0
    %p42 = scmp.lt.s32.totalorder %s41, 0
    %s43 = scalar_select %p42, %s41, 0
    %p44 = scmp.lt.s32.totalorder %s43, 0
    %s45 = scalar_select %p44, %s43, 0
    %s46 = scalar_lea.vmem %s1, %s45
    %s47 = sadd.s32 0, 0
    %p48 = scmp.lt.s32.totalorder %s47, 0
    %s49 = scalar_select %p48, %s47, 0
    %s50 = smul.u32 13, %s49
    %s51 = sadd.s32 0, 0
    %p52 = scmp.lt.s32.totalorder %s51, 0
    %s53 = scalar_select %p52, %s51, 0
    %p54 = scmp.lt.s32.totalorder %s53, 0
    %s55 = scalar_select %p54, %s53, 0
    %s56 = scalar_lea.vmem %s1, %s55
    %s57 = sadd.s32 0, 0
    %p58 = scmp.lt.s32.totalorder %s57, 0
    %s59 = scalar_select %p58, %s57, 0
    %s60 = sadd.s32 0, 0
    %p61 = scmp.eq.s32.totalorder 0, 0
    // Predicated region
    $region14: #{tpu_custom_call.1} parent=1 // pred_check
      %p62 = pneg %p61
    $region15: #{tpu_custom_call.1} parent=1 // pred_check_branch
      %64 = sbr.rel (%p62) target = $region17
    $region16: #{tpu_custom_call.1} parent=1 // pred_region
      %vm65 = vcmask 0
      %66 = vst.msk [vmem:[#allocation2] sm:$0x1] %vm65, 0.0
      %67 = vst.msk [vmem:[#allocation3] sm:$0x1] %vm65, 0.0
    $region17: #{tpu_custom_call.1} parent=1 // pred_fallthru
      _
    %p68 = scmp.lt.s32.totalorder %s60, 1
    // Predicated region
    $region18: #{tpu_custom_call.1} parent=1 // pred_check
      %p69 = pneg %p68
    $region19: #{tpu_custom_call.1} parent=1 // pred_check_branch
      %71 = sbr.rel (%p69) target = $region21
    $region20: #{tpu_custom_call.1} parent=1 // pred_region
      %v72 = vld [vmem:[#allocation4] sm:$0xff]
      %v73 = vld [vmem:[#allocation4 + $0x8] sm:$0xff]
      %v74 = vld [vmem:[#allocation4 + $0x10] sm:$0xff]
      %v75 = vld [vmem:[#allocation4 + $0x18] sm:$0xff]
      %v76 = vld [vmem:[#allocation4 + $0x20] sm:$0xff]
      %v77 = vld [vmem:[#allocation4 + $0x28] sm:$0xff]
      %v78 = vld [vmem:[#allocation4 + $0x30] sm:$0xff]
      %v79 = vld [vmem:[#allocation4 + $0x38] sm:$0xff]
      %v80 = vld [vmem:[#allocation4 + $0x40] sm:$0xff]
      %v81 = vld [vmem:[#allocation4 + $0x48] sm:$0xff]
      %v82 = vld [vmem:[#allocation4 + $0x50] sm:$0xff]
      %v83 = vld [vmem:[#allocation4 + $0x58] sm:$0xff]
      %v84 = vld [vmem:[#allocation4 + $0x60] sm:$0xf]
      %v85 = vld [vmem:[%s56] sm:$0x1]
      %v86 = vlaneseq
      %v87 = vshrl.u32 %v86, 7
      %v88 = vsub.s32 0, %v87
      %v89 = vrot.slane %v85, %v88
      %91 = vbcast.lane.b32.xlu0 %v89, 256
      %v92 = vpop.permute.xlu0 %91
      %s94 = sor.u32 256, 8
      %95 = vbcast.lane.b32.xlu0 %v89, %s94
      %v96 = vpop.permute.xlu0 %95
      %s98 = sor.u32 256, 16
      %99 = vbcast.lane.b32.xlu0 %v89, %s98
      %v100 = vpop.permute.xlu0 %99
      %s102 = sor.u32 256, 24
      %103 = vbcast.lane.b32.xlu0 %v89, %s102
      %v104 = vpop.permute.xlu0 %103
      %s106 = sor.u32 256, 32
      %107 = vbcast.lane.b32.xlu0 %v89, %s106
      %v108 = vpop.permute.xlu0 %107
      %s110 = sor.u32 256, 40
      %111 = vbcast.lane.b32.xlu0 %v89, %s110
      %v112 = vpop.permute.xlu0 %111
      %s114 = sor.u32 256, 48
      %115 = vbcast.lane.b32.xlu0 %v89, %s114
      %v116 = vpop.permute.xlu0 %115
      %s118 = sor.u32 256, 56
      %119 = vbcast.lane.b32.xlu0 %v89, %s118
      %v120 = vpop.permute.xlu0 %119
      %s122 = sor.u32 256, 64
      %123 = vbcast.lane.b32.xlu0 %v89, %s122
      %v124 = vpop.permute.xlu0 %123
      %s126 = sor.u32 256, 72
      %127 = vbcast.lane.b32.xlu0 %v89, %s126
      %v128 = vpop.permute.xlu0 %127
      %s130 = sor.u32 256, 80
      %131 = vbcast.lane.b32.xlu0 %v89, %s130
      %v132 = vpop.permute.xlu0 %131
      %s134 = sor.u32 256, 88
      %135 = vbcast.lane.b32.xlu0 %v89, %s134
      %v136 = vpop.permute.xlu0 %135
      %s138 = sor.u32 256, 96
      %139 = vbcast.lane.b32.xlu0 %v89, %s138
      %v140 = vpop.permute.xlu0 %139
      %v141 = vlaneseq
      %v142 = vshrl.u32 %v141, 7
      %v143 = vadd.s32 %v142, 8
      %v144 = vadd.s32 %v142, 16
      %v145 = vadd.s32 %v142, 24
      %v146 = vadd.s32 %v142, 32
      %v147 = vadd.s32 %v142, 40
      %v148 = vadd.s32 %v142, 48
      %v149 = vadd.s32 %v142, 56
      %v150 = vadd.s32 %v142, 64
      %v151 = vadd.s32 %v142, 72
      %v152 = vadd.s32 %v142, 80
      %v153 = vadd.s32 %v142, 88
      %v154 = vadd.s32 %v142, 96
      %s155 = smul.u32 %s60, 100
      %v156 = vstv %s155
      %v157 = vadd.s32 %v142, %v156
      %v158 = vadd.s32 %v143, %v156
      %v159 = vadd.s32 %v144, %v156
      %v160 = vadd.s32 %v145, %v156
      %v161 = vadd.s32 %v146, %v156
      %v162 = vadd.s32 %v147, %v156
      %v163 = vadd.s32 %v148, %v156
      %v164 = vadd.s32 %v149, %v156
      %v165 = vadd.s32 %v150, %v156
      %v166 = vadd.s32 %v151, %v156
      %v167 = vadd.s32 %v152, %v156
      %v168 = vadd.s32 %v153, %v156
      %v169 = vadd.s32 %v154, %v156
      %vm170 = vcmp.lt.s32.totalorder %v157, 100
      %vm171 = vcmp.lt.s32.totalorder %v158, 100
      %vm172 = vcmp.lt.s32.totalorder %v159, 100
      %vm173 = vcmp.lt.s32.totalorder %v160, 100
      %vm174 = vcmp.lt.s32.totalorder %v161, 100
      %vm175 = vcmp.lt.s32.totalorder %v162, 100
      %vm176 = vcmp.lt.s32.totalorder %v163, 100
      %vm177 = vcmp.lt.s32.totalorder %v164, 100
      %vm178 = vcmp.lt.s32.totalorder %v165, 100
      %vm179 = vcmp.lt.s32.totalorder %v166, 100
      %vm180 = vcmp.lt.s32.totalorder %v167, 100
      %vm181 = vcmp.lt.s32.totalorder %v168, 100
      %vm182 = vcmp.lt.s32.totalorder %v169, 100
      %183 = vmax.xlane.f32.xlu0 %v72
      %v184 = vpop.xlane.xlu0 %183
      %185 = vmax.xlane.f32.xlu0 %v73
      %v186 = vpop.xlane.xlu0 %185
      %187 = vmax.xlane.f32.xlu0 %v74
      %v188 = vpop.xlane.xlu0 %187
      %189 = vmax.xlane.f32.xlu0 %v75
      %v190 = vpop.xlane.xlu0 %189
      %191 = vmax.xlane.f32.xlu0 %v76
      %v192 = vpop.xlane.xlu0 %191
      %193 = vmax.xlane.f32.xlu0 %v77
      %v194 = vpop.xlane.xlu0 %193
      %195 = vmax.xlane.f32.xlu0 %v78
      %v196 = vpop.xlane.xlu0 %195
      %197 = vmax.xlane.f32.xlu0 %v79
      %v198 = vpop.xlane.xlu0 %197
      %199 = vmax.xlane.f32.xlu0 %v80
      %v200 = vpop.xlane.xlu0 %199
      %201 = vmax.xlane.f32.xlu0 %v81
      %v202 = vpop.xlane.xlu0 %201
      %203 = vmax.xlane.f32.xlu0 %v82
      %v204 = vpop.xlane.xlu0 %203
      %205 = vmax.xlane.f32.xlu0 %v83
      %v206 = vpop.xlane.xlu0 %205
      %vm207 = vcmask 1043456
      %v208 = vsel %vm207, %v84, -inf
      %209 = vmax.xlane.f32.xlu0 %v208
      %v210 = vpop.xlane.xlu0 %209
      %v211 = vsub.f32 %v72, %v184
      %v212 = vsub.f32 %v73, %v186
      %v213 = vsub.f32 %v74, %v188
      %v214 = vsub.f32 %v75, %v190
      %v215 = vsub.f32 %v76, %v192
      %v216 = vsub.f32 %v77, %v194
      %v217 = vsub.f32 %v78, %v196
      %v218 = vsub.f32 %v79, %v198
      %v219 = vsub.f32 %v80, %v200
      %v220 = vsub.f32 %v81, %v202
      %v221 = vsub.f32 %v82, %v204
      %v222 = vsub.f32 %v83, %v206
      %v223 = vsub.f32 %v84, %v210
      %v224 = vmul.f32 %v211, 1.442695
      %v225 = vpow.pop %v224
      %v226 = vmul.f32 %v212, 1.442695
      %v227 = vpow.pop %v226
      %v228 = vmul.f32 %v213, 1.442695
      %v229 = vpow.pop %v228
      %v230 = vmul.f32 %v214, 1.442695
      %v231 = vpow.pop %v230
      %v232 = vmul.f32 %v215, 1.442695
      %v233 = vpow.pop %v232
      %v234 = vmul.f32 %v216, 1.442695
      %v235 = vpow.pop %v234
      %v236 = vmul.f32 %v217, 1.442695
      %v237 = vpow.pop %v236
      %v238 = vmul.f32 %v218, 1.442695
      %v239 = vpow.pop %v238
      %v240 = vmul.f32 %v219, 1.442695
      %v241 = vpow.pop %v240
      %v242 = vmul.f32 %v220, 1.442695
      %v243 = vpow.pop %v242
      %v244 = vmul.f32 %v221, 1.442695
      %v245 = vpow.pop %v244
      %v246 = vmul.f32 %v222, 1.442695
      %v247 = vpow.pop %v246
      %v248 = vmul.f32 %v223, 1.442695
      %v249 = vpow.pop %v248
      %250 = vadd.xlane.f32.xlu0 %v225
      %v251 = vpop.xlane.xlu0 %250
      %252 = vadd.xlane.f32.xlu0 %v227
      %v253 = vpop.xlane.xlu0 %252
      %254 = vadd.xlane.f32.xlu0 %v229
      %v255 = vpop.xlane.xlu0 %254
      %256 = vadd.xlane.f32.xlu0 %v231
      %v257 = vpop.xlane.xlu0 %256
      %258 = vadd.xlane.f32.xlu0 %v233
      %v259 = vpop.xlane.xlu0 %258
      %260 = vadd.xlane.f32.xlu0 %v235
      %v261 = vpop.xlane.xlu0 %260
      %262 = vadd.xlane.f32.xlu0 %v237
      %v263 = vpop.xlane.xlu0 %262
      %264 = vadd.xlane.f32.xlu0 %v239
      %v265 = vpop.xlane.xlu0 %264
      %266 = vadd.xlane.f32.xlu0 %v241
      %v267 = vpop.xlane.xlu0 %266
      %268 = vadd.xlane.f32.xlu0 %v243
      %v269 = vpop.xlane.xlu0 %268
      %270 = vadd.xlane.f32.xlu0 %v245
      %v271 = vpop.xlane.xlu0 %270
      %272 = vadd.xlane.f32.xlu0 %v247
      %v273 = vpop.xlane.xlu0 %272
      %v274 = vsel %vm207, %v249, 0.0
      %275 = vadd.xlane.f32.xlu0 %v274
      %v276 = vpop.xlane.xlu0 %275
      %v277 = vlog2.pop %v251
      %v278 = vmul.f32 %v277, 0.6931472
      %v279 = vlog2.pop %v253
      %v280 = vmul.f32 %v279, 0.6931472
      %v281 = vlog2.pop %v255
      %v282 = vmul.f32 %v281, 0.6931472
      %v283 = vlog2.pop %v257
      %v284 = vmul.f32 %v283, 0.6931472
      %v285 = vlog2.pop %v259
      %v286 = vmul.f32 %v285, 0.6931472
      %v287 = vlog2.pop %v261
      %v288 = vmul.f32 %v287, 0.6931472
      %v289 = vlog2.pop %v263
      %v290 = vmul.f32 %v289, 0.6931472
      %v291 = vlog2.pop %v265
      %v292 = vmul.f32 %v291, 0.6931472
      %v293 = vlog2.pop %v267
      %v294 = vmul.f32 %v293, 0.6931472
      %v295 = vlog2.pop %v269
      %v296 = vmul.f32 %v295, 0.6931472
      %v297 = vlog2.pop %v271
      %v298 = vmul.f32 %v297, 0.6931472
      %v299 = vlog2.pop %v273
      %v300 = vmul.f32 %v299, 0.6931472
      %v301 = vlog2.pop %v276
      %v302 = vmul.f32 %v301, 0.6931472
      %v303 = vadd.f32 %v184, %v278
      %v304 = vadd.f32 %v186, %v280
      %v305 = vadd.f32 %v188, %v282
      %v306 = vadd.f32 %v190, %v284
      %v307 = vadd.f32 %v192, %v286
      %v308 = vadd.f32 %v194, %v288
      %v309 = vadd.f32 %v196, %v290
      %v310 = vadd.f32 %v198, %v292
      %v311 = vadd.f32 %v200, %v294
      %v312 = vadd.f32 %v202, %v296
      %v313 = vadd.f32 %v204, %v298
      %v314 = vadd.f32 %v206, %v300
      %v315 = vadd.f32 %v210, %v302
      %v316 = vlaneseq
      %v317 = vand.u32 %v316, 127
      %vm318 = vcmp.eq.s32.totalorder %v317, %v92
      %vm319 = vcmp.eq.s32.totalorder %v317, %v96
      %vm320 = vcmp.eq.s32.totalorder %v317, %v100
      %vm321 = vcmp.eq.s32.totalorder %v317, %v104
      %vm322 = vcmp.eq.s32.totalorder %v317, %v108
      %vm323 = vcmp.eq.s32.totalorder %v317, %v112
      %vm324 = vcmp.eq.s32.totalorder %v317, %v116
      %vm325 = vcmp.eq.s32.totalorder %v317, %v120
      %vm326 = vcmp.eq.s32.totalorder %v317, %v124
      %vm327 = vcmp.eq.s32.totalorder %v317, %v128
      %vm328 = vcmp.eq.s32.totalorder %v317, %v132
      %vm329 = vcmp.eq.s32.totalorder %v317, %v136
      %vm330 = vcmp.eq.s32.totalorder %v317, %v140
      %v331 = vsel %vm318, %v72, 0.0
      %v332 = vsel %vm319, %v73, 0.0
      %v333 = vsel %vm320, %v74, 0.0
      %v334 = vsel %vm321, %v75, 0.0
      %v335 = vsel %vm322, %v76, 0.0
      %v336 = vsel %vm323, %v77, 0.0
      %v337 = vsel %vm324, %v78, 0.0
      %v338 = vsel %vm325, %v79, 0.0
      %v339 = vsel %vm326, %v80, 0.0
      %v340 = vsel %vm327, %v81, 0.0
      %v341 = vsel %vm328, %v82, 0.0
      %v342 = vsel %vm329, %v83, 0.0
      %v343 = vsel %vm330, %v84, 0.0
      %344 = vadd.xlane.f32.xlu0 %v331
      %v345 = vpop.xlane.xlu0 %344
      %346 = vadd.xlane.f32.xlu0 %v332
      %v347 = vpop.xlane.xlu0 %346
      %348 = vadd.xlane.f32.xlu0 %v333
      %v349 = vpop.xlane.xlu0 %348
      %350 = vadd.xlane.f32.xlu0 %v334
      %v351 = vpop.xlane.xlu0 %350
      %352 = vadd.xlane.f32.xlu0 %v335
      %v353 = vpop.xlane.xlu0 %352
      %354 = vadd.xlane.f32.xlu0 %v336
      %v355 = vpop.xlane.xlu0 %354
      %356 = vadd.xlane.f32.xlu0 %v337
      %v357 = vpop.xlane.xlu0 %356
      %358 = vadd.xlane.f32.xlu0 %v338
      %v359 = vpop.xlane.xlu0 %358
      %360 = vadd.xlane.f32.xlu0 %v339
      %v361 = vpop.xlane.xlu0 %360
      %362 = vadd.xlane.f32.xlu0 %v340
      %v363 = vpop.xlane.xlu0 %362
      %364 = vadd.xlane.f32.xlu0 %v341
      %v365 = vpop.xlane.xlu0 %364
      %366 = vadd.xlane.f32.xlu0 %v342
      %v367 = vpop.xlane.xlu0 %366
      %v368 = vsel %vm207, %v343, 0.0
      %369 = vadd.xlane.f32.xlu0 %v368
      %v370 = vpop.xlane.xlu0 %369
      %v371 = vsub.f32 %v303, %v345
      %v372 = vsub.f32 %v304, %v347
      %v373 = vsub.f32 %v305, %v349
      %v374 = vsub.f32 %v306, %v351
      %v375 = vsub.f32 %v307, %v353
      %v376 = vsub.f32 %v308, %v355
      %v377 = vsub.f32 %v309, %v357
      %v378 = vsub.f32 %v310, %v359
      %v379 = vsub.f32 %v311, %v361
      %v380 = vsub.f32 %v312, %v363
      %v381 = vsub.f32 %v313, %v365
      %v382 = vsub.f32 %v314, %v367
      %v383 = vsub.f32 %v315, %v370
      %v384 = vsub.f32 0.0, %v371
      %v385 = vsub.f32 0.0, %v372
      %v386 = vsub.f32 0.0, %v373
      %v387 = vsub.f32 0.0, %v374
      %v388 = vsub.f32 0.0, %v375
      %v389 = vsub.f32 0.0, %v376
      %v390 = vsub.f32 0.0, %v377
      %v391 = vsub.f32 0.0, %v378
      %v392 = vsub.f32 0.0, %v379
      %v393 = vsub.f32 0.0, %v380
      %v394 = vsub.f32 0.0, %v381
      %v395 = vsub.f32 0.0, %v382
      %v396 = vsub.f32 0.0, %v383
      %v397 = vmul.f32 %v384, 1.442695
      %v398 = vpow.pop %v397
      %v399 = vmul.f32 %v385, 1.442695
      %v400 = vpow.pop %v399
      %v401 = vmul.f32 %v386, 1.442695
      %v402 = vpow.pop %v401
      %v403 = vmul.f32 %v387, 1.442695
      %v404 = vpow.pop %v403
      %v405 = vmul.f32 %v388, 1.442695
      %v406 = vpow.pop %v405
      %v407 = vmul.f32 %v389, 1.442695
      %v408 = vpow.pop %v407
      %v409 = vmul.f32 %v390, 1.442695
      %v410 = vpow.pop %v409
      %v411 = vmul.f32 %v391, 1.442695
      %v412 = vpow.pop %v411
      %v413 = vmul.f32 %v392, 1.442695
      %v414 = vpow.pop %v413
      %v415 = vmul.f32 %v393, 1.442695
      %v416 = vpow.pop %v415
      %v417 = vmul.f32 %v394, 1.442695
      %v418 = vpow.pop %v417
      %v419 = vmul.f32 %v395, 1.442695
      %v420 = vpow.pop %v419
      %v421 = vmul.f32 %v396, 1.442695
      %v422 = vpow.pop %v421
      %v423 = vsub.f32 1.0, %v398
      %v424 = vsub.f32 1.0, %v400
      %v425 = vsub.f32 1.0, %v402
      %v426 = vsub.f32 1.0, %v404
      %v427 = vsub.f32 1.0, %v406
      %v428 = vsub.f32 1.0, %v408
      %v429 = vsub.f32 1.0, %v410
      %v430 = vsub.f32 1.0, %v412
      %v431 = vsub.f32 1.0, %v414
      %v432 = vsub.f32 1.0, %v416
      %v433 = vsub.f32 1.0, %v418
      %v434 = vsub.f32 1.0, %v420
      %v435 = vsub.f32 1.0, %v422
      %v436 = vmul.f32 %v423, %v423
      %v437 = vmul.f32 %v424, %v424
      %v438 = vmul.f32 %v425, %v425
      %v439 = vmul.f32 %v426, %v426
      %v440 = vmul.f32 %v427, %v427
      %v441 = vmul.f32 %v428, %v428
      %v442 = vmul.f32 %v429, %v429
      %v443 = vmul.f32 %v430, %v430
      %v444 = vmul.f32 %v431, %v431
      %v445 = vmul.f32 %v432, %v432
      %v446 = vmul.f32 %v433, %v433
      %v447 = vmul.f32 %v434, %v434
      %v448 = vmul.f32 %v435, %v435
      %v449 = vmul.f32 %v436, %v371
      %v450 = vmul.f32 %v437, %v372
      %v451 = vmul.f32 %v438, %v373
      %v452 = vmul.f32 %v439, %v374
      %v453 = vmul.f32 %v440, %v375
      %v454 = vmul.f32 %v441, %v376
      %v455 = vmul.f32 %v442, %v377
      %v456 = vmul.f32 %v443, %v378
      %v457 = vmul.f32 %v444, %v379
      %v458 = vmul.f32 %v445, %v380
      %v459 = vmul.f32 %v446, %v381
      %v460 = vmul.f32 %v447, %v382
      %v461 = vmul.f32 %v448, %v383
      %v462 = vsel %vm170, %v449, 0.0
      %v463 = vsel %vm171, %v450, 0.0
      %v464 = vsel %vm172, %v451, 0.0
      %v465 = vsel %vm173, %v452, 0.0
      %v466 = vsel %vm174, %v453, 0.0
      %v467 = vsel %vm175, %v454, 0.0
      %v468 = vsel %vm176, %v455, 0.0
      %v469 = vsel %vm177, %v456, 0.0
      %v470 = vsel %vm178, %v457, 0.0
      %v471 = vsel %vm179, %v458, 0.0
      %v472 = vsel %vm180, %v459, 0.0
      %v473 = vsel %vm181, %v460, 0.0
      %v474 = vsel %vm182, %v461, 0.0
      %v475 = vmul.f32 %v72, %v72
      %v476 = vmul.f32 %v73, %v73
      %v477 = vmul.f32 %v74, %v74
      %v478 = vmul.f32 %v75, %v75
      %v479 = vmul.f32 %v76, %v76
      %v480 = vmul.f32 %v77, %v77
      %v481 = vmul.f32 %v78, %v78
      %v482 = vmul.f32 %v79, %v79
      %v483 = vmul.f32 %v80, %v80
      %v484 = vmul.f32 %v81, %v81
      %v485 = vmul.f32 %v82, %v82
      %v486 = vmul.f32 %v83, %v83
      %v487 = vmul.f32 %v84, %v84
      %488 = vadd.xlane.f32.xlu0 %v475
      %v489 = vpop.xlane.xlu0 %488
      %490 = vadd.xlane.f32.xlu0 %v476
      %v491 = vpop.xlane.xlu0 %490
      %492 = vadd.xlane.f32.xlu0 %v477
      %v493 = vpop.xlane.xlu0 %492
      %494 = vadd.xlane.f32.xlu0 %v478
      %v495 = vpop.xlane.xlu0 %494
      %496 = vadd.xlane.f32.xlu0 %v479
      %v497 = vpop.xlane.xlu0 %496
      %498 = vadd.xlane.f32.xlu0 %v480
      %v499 = vpop.xlane.xlu0 %498
      %500 = vadd.xlane.f32.xlu0 %v481
      %v501 = vpop.xlane.xlu0 %500
      %502 = vadd.xlane.f32.xlu0 %v482
      %v503 = vpop.xlane.xlu0 %502
      %504 = vadd.xlane.f32.xlu0 %v483
      %v505 = vpop.xlane.xlu0 %504
      %506 = vadd.xlane.f32.xlu0 %v484
      %v507 = vpop.xlane.xlu0 %506
      %508 = vadd.xlane.f32.xlu0 %v485
      %v509 = vpop.xlane.xlu0 %508
      %510 = vadd.xlane.f32.xlu0 %v486
      %v511 = vpop.xlane.xlu0 %510
      %v512 = vsel %vm207, %v487, 0.0
      %513 = vadd.xlane.f32.xlu0 %v512
      %v514 = vpop.xlane.xlu0 %513
      %v515 = vsel %vm170, %v489, 0.0
      %v516 = vsel %vm171, %v491, 0.0
      %v517 = vsel %vm172, %v493, 0.0
      %v518 = vsel %vm173, %v495, 0.0
      %v519 = vsel %vm174, %v497, 0.0
      %v520 = vsel %vm175, %v499, 0.0
      %v521 = vsel %vm176, %v501, 0.0
      %v522 = vsel %vm177, %v503, 0.0
      %v523 = vsel %vm178, %v505, 0.0
      %v524 = vsel %vm179, %v507, 0.0
      %v525 = vsel %vm180, %v509, 0.0
      %v526 = vsel %vm181, %v511, 0.0
      %v527 = vsel %vm182, %v514, 0.0
      %v528 = vld [vmem:[#allocation2] sm:$0x1]
      %vm529 = vcmask 7168
      %v530 = vsel %vm529, %v462, 0.0
      %v531 = vsel %vm529, %v463, 0.0
      %v532 = vadd.f32 %v530, %v531
      %v533 = vsel %vm529, %v464, 0.0
      %v534 = vadd.f32 %v532, %v533
      %v535 = vsel %vm529, %v465, 0.0
      %v536 = vadd.f32 %v534, %v535
      %v537 = vsel %vm529, %v466, 0.0
      %v538 = vadd.f32 %v536, %v537
      %v539 = vsel %vm529, %v467, 0.0
      %v540 = vadd.f32 %v538, %v539
      %v541 = vsel %vm529, %v468, 0.0
      %v542 = vadd.f32 %v540, %v541
      %v543 = vsel %vm529, %v469, 0.0
      %v544 = vadd.f32 %v542, %v543
      %v545 = vsel %vm529, %v470, 0.0
      %v546 = vadd.f32 %v544, %v545
      %v547 = vsel %vm529, %v471, 0.0
      %v548 = vadd.f32 %v546, %v547
      %v549 = vsel %vm529, %v472, 0.0
      %v550 = vadd.f32 %v548, %v549
      %v551 = vsel %vm529, %v473, 0.0
      %v552 = vadd.f32 %v550, %v551
      %vm553 = vcmask 3072
      %v554 = vsel %vm553, %v474, 0.0
      %v555 = vadd.f32 %v552, %v554
      %556 = vadd.xlane.f32.xlu0 %v555
      %v557 = vpop.xlane.xlu0 %556
      %v558 = vrot.slane %v557, 4
      %v559 = vadd.f32 %v557, %v558
      %v560 = vrot.slane %v559, 2
      %v561 = vadd.f32 %v559, %v560
      %v562 = vrot.slane %v561, 1
      %v563 = vadd.f32 %v561, %v562
      %s564 = vtos %v563
      %v565 = vstv %s564
      %v566 = vadd.f32 %v528, %v565
      %vm567 = vcmask 0
      %568 = vst.msk [vmem:[#allocation2] sm:$0x1] %vm567, %v566
      %v569 = vld [vmem:[#allocation3] sm:$0x1]
      %v570 = vsel %vm529, %v515, 0.0
      %v571 = vsel %vm529, %v516, 0.0
      %v572 = vadd.f32 %v570, %v571
      %v573 = vsel %vm529, %v517, 0.0
      %v574 = vadd.f32 %v572, %v573
      %v575 = vsel %vm529, %v518, 0.0
      %v576 = vadd.f32 %v574, %v575
      %v577 = vsel %vm529, %v519, 0.0
      %v578 = vadd.f32 %v576, %v577
      %v579 = vsel %vm529, %v520, 0.0
      %v580 = vadd.f32 %v578, %v579
      %v581 = vsel %vm529, %v521, 0.0
      %v582 = vadd.f32 %v580, %v581
      %v583 = vsel %vm529, %v522, 0.0
      %v584 = vadd.f32 %v582, %v583
      %v585 = vsel %vm529, %v523, 0.0
      %v586 = vadd.f32 %v584, %v585
      %v587 = vsel %vm529, %v524, 0.0
      %v588 = vadd.f32 %v586, %v587
      %v589 = vsel %vm529, %v525, 0.0
      %v590 = vadd.f32 %v588, %v589
      %v591 = vsel %vm529, %v526, 0.0
      %v592 = vadd.f32 %v590, %v591
      %v593 = vsel %vm553, %v527, 0.0
      %v594 = vadd.f32 %v592, %v593
      %595 = vadd.xlane.f32.xlu0 %v594
      %v596 = vpop.xlane.xlu0 %595
      %v597 = vrot.slane %v596, 4
      %v598 = vadd.f32 %v596, %v597
      %v599 = vrot.slane %v598, 2
      %v600 = vadd.f32 %v598, %v599
      %v601 = vrot.slane %v600, 1
      %v602 = vadd.f32 %v600, %v601
      %s603 = vtos %v602
      %v604 = vstv %s603
      %v605 = vadd.f32 %v569, %v604
      %606 = vst.msk [vmem:[#allocation3] sm:$0x1] %vm567, %v605
    $region21: #{tpu_custom_call.1} parent=1 // pred_fallthru
      _
    // Predicated region
    $region22: #{tpu_custom_call.1} parent=1 // pred_check
      %p607 = pneg %p61
    $region23: #{tpu_custom_call.1} parent=1 // pred_check_branch
      %609 = sbr.rel (%p607) target = $region25
    $region24: #{tpu_custom_call.1} parent=1 // pred_region
      %v610 = vlaneseq
      %v611 = vshrl.u32 %v610, 7
      %v612 = vlaneseq
      %v613 = vand.u32 %v612, 127
      %v614 = vld [vmem:[#allocation2] sm:$0x1]
      %v616 = vlaneseq
      %v617 = vshrl.u32 %v616, 7
      %v618 = vsub.s32 0, %v617
      %v619 = vrot.slane %v614, %v618
      %620 = vset.pattern.permute.xlu0 0
      %621 = vperm.xlu0 %620, %v619
      %v622 = vpop.permute.xlu0 %621
      %v624 = vld [vmem:[#allocation3] sm:$0x1]
      %v626 = vlaneseq
      %v627 = vshrl.u32 %v626, 7
      %v628 = vsub.s32 0, %v627
      %v629 = vrot.slane %v624, %v628
      %630 = vset.pattern.permute.xlu0 0
      %631 = vperm.xlu0 %630, %v629
      %v632 = vpop.permute.xlu0 %631
      %vm634 = vcmp.eq.s32.totalorder %v611, 0
      %vm635 = vcmp.eq.s32.totalorder %v613, 0
      %vm636 = vmand %vm634, %vm635
      %vm637 = vcmp.eq.s32.totalorder %v613, 1
      %vm638 = vmand %vm634, %vm637
      %v639 = vsel %vm638, %v632, 0.0
      %v640 = vsel %vm636, %v622, %v639
      %641 = vst [vmem:[#allocation7] sm:$0xff] %v640
    $region25: #{tpu_custom_call.1} parent=1 // pred_fallthru
      _
    // Predicated region
    $region26: #{tpu_custom_call.1} parent=1 // pred_check
      _
    $region27: #{tpu_custom_call.1} parent=1 // pred_check_branch
      %643 = sbr.rel (0) target = $region29
    $region28: #{tpu_custom_call.1} parent=1 // pred_region
      %s645 = ssub.s32 128, 128
      %646 = vsyncadd [#allocation6], %s645
      %s648 = sshll.u32 [#allocation7], 4
      %s649 = int_to_ptr.vmem [resolvable:$true] %s648
      %651 = dma.vmem_to_hbm [thread:$0]  %s649, 128, %s2, [#allocation6]
    $region29: #{tpu_custom_call.1} parent=1 // pred_fallthru
      _
    // Predicated region
    $region30: #{tpu_custom_call.1} parent=1 // pred_check
      _
    $region31: #{tpu_custom_call.1} parent=1 // pred_check_branch
      %653 = sbr.rel (0) target = $region33
    $region32: #{tpu_custom_call.1} parent=1 // pred_region
      %654 = dma.done [#allocation6], 128
    $region33: #{tpu_custom_call.1} parent=1 // pred_fallthru
      _
    %655 = vsyncpa [#allocation5], 1
    %656 = vsyncpa [#allocation6], 1

</llo_original>
